<compile_context>
chip_gen: v7x
topology: tpu7x:2x2x1
jax: 0.10.0
libtpu: 0.0.40
codegen_flags: <defaults>
</compile_context>

<pallas_src>
import jax
import jax.numpy as jnp
from jax.experimental import pallas as pl
from jax.experimental.pallas import tpu as pltpu


def _scst_kernel(end_ref, logp_ref, seqs_ref, reward_ref, loss_ref):
    """SCST loss.

    PyTorch reference:
        reward = repeat(reward[:, None], T, 1)
        mask   = (sampled_seqs != end_idx).float()
        mask   = cat([ones(B, 1), mask[:, :-1]], 1)
        loss   = (-sampled_logprobs * reward * mask).sum(1).mean()
    """
    end_idx = end_ref[0]                              # SMEM scalar (runtime value)
    logp = logp_ref[...].astype(jnp.float32)          # (B, T), upcast in-kernel
    seqs = seqs_ref[...]                              # (B, T) i32
    reward = reward_ref[...]                          # (B, 1) f32

    B, T = logp.shape
    # torch.cat([ones(B,1), mask[:, :-1]], 1) == shift-right by 1 with col 0 = 1.
    # pltpu.roll is circular; the wrapped last column lands in col 0, which is
    # forced True by the (col == 0) term — keep these coupled.
    rolled = pltpu.roll(seqs, shift=1, axis=1)        # XLU rotate (free vs VALU)
    col = jax.lax.broadcasted_iota(jnp.int32, (B, T), 1)
    mask = ((rolled != end_idx) | (col == 0)).astype(jnp.float32)

    # Factor reward out of the (B,T) elementwise path.
    per_seq = jnp.sum(logp * mask, axis=1, keepdims=True)            # (B, 1)
    loss_ref[...] = jnp.mean(-reward * per_seq, axis=0, keepdims=True)  # (1, 1)


def scst_loss(sampled_logprobs, sampled_seqs, sampled_score, greedy_score,
              end_idx):
    """Returns (reward [B], score [B], loss scalar), matching ScstWrapper.scst.

    `sampled_logprobs` is used in its native dtype (f32 or bf16);
    `sampled_seqs` must be int32; `end_idx` may be a Python int or a traced
    scalar (it is passed to the kernel as an SMEM value, no recompile churn).
    """
    B, T = sampled_logprobs.shape
    score = sampled_score.astype(jnp.float32)                  # output['score']
    reward = score - greedy_score.astype(jnp.float32)          # output['reward']
    end_arr = jnp.asarray(end_idx, dtype=jnp.int32).reshape((1,))

    loss = pl.pallas_call(
        _scst_kernel,
        out_shape=jax.ShapeDtypeStruct((1, 1), jnp.float32),
        in_specs=[
            pl.BlockSpec(memory_space=pltpu.MemorySpace.SMEM),   # end_idx
            pl.BlockSpec((B, T), lambda: (0, 0)),                # logprobs
            pl.BlockSpec((B, T), lambda: (0, 0)),                # seqs
            pl.BlockSpec((B, 1), lambda: (0, 0)),                # reward
        ],
        out_specs=pl.BlockSpec((1, 1), lambda: (0, 0)),
    )(end_arr, sampled_logprobs, sampled_seqs, reward.reshape(B, 1))
    return reward, score, loss[0, 0]


def _reference(sampled_logprobs, sampled_seqs, sampled_score, greedy_score,
               end_idx):
    """Plain-JAX transcription of the PyTorch code for a correctness check."""
    B, T = sampled_logprobs.shape
    reward = sampled_score - greedy_score
    reward_rep = jnp.repeat(reward[:, None], T, axis=1)
    mask = (sampled_seqs != end_idx).astype(jnp.float32)
    mask = jnp.concatenate([jnp.ones((B, 1), jnp.float32), mask[:, :-1]], axis=1)
    loss = -sampled_logprobs.astype(jnp.float32) * reward_rep * mask
    loss = jnp.sum(loss, axis=1).mean()
    return reward, sampled_score, loss


if __name__ == "__main__":
    # Small shapes implied by the forward pass: batch B sequences of length
    # T = max_length, per-token sampled logprobs, per-batch scorer scores.
    B, T = 8, 128
    END_IDX = 9          # model.end_idx
    VOCAB = 50           # vocabulary size (used only to draw synthetic seqs)

    key = jax.random.PRNGKey(0)
    k_lp, k_seq, k_ss, k_gs = jax.random.split(key, 4)

    # TODO(synk): self.model.encoder / self.model.sample (greedy & stochastic
    # decoding) and the external CIDEr/SPIDEr `scorer` are injected modules
    # with no definition in ScstWrapper; their outputs are stood in by
    # deterministic synthetic tensors below.
    sampled_logprobs = -jnp.abs(jax.random.normal(k_lp, (B, T), jnp.float32))
    sampled_seqs = jax.random.randint(k_seq, (B, T), 0, VOCAB, jnp.int32)
    sampled_score = jax.random.uniform(k_ss, (B,), jnp.float32)   # scorer(sampled)
    greedy_score = jax.random.uniform(k_gs, (B,), jnp.float32)    # scorer(greedy)

    reward, score, loss = scst_loss(sampled_logprobs, sampled_seqs,
                                    sampled_score, greedy_score, END_IDX)
    jax.block_until_ready((reward, score, loss))

    ref_reward, ref_score, ref_loss = _reference(
        sampled_logprobs, sampled_seqs, sampled_score, greedy_score, END_IDX)

    assert jnp.allclose(reward, ref_reward, atol=1e-5, rtol=1e-5)
    assert jnp.allclose(score, ref_score, atol=1e-5, rtol=1e-5)
    assert jnp.allclose(loss, ref_loss, atol=1e-4, rtol=1e-4)

    print("KERNEL_OK")
</pallas_src>

<mosaic_0001>
module attributes {stable_mosaic.version = 11 : i64} {
  func.func @_scst_kernel(%arg0: memref<1xi32, #tpu.memory_space<smem>>, %arg1: memref<8x128xf32, #tpu.memory_space<vmem>>, %arg2: memref<8x128xi32, #tpu.memory_space<vmem>>, %arg3: memref<8x1xf32, #tpu.memory_space<vmem>>, %arg4: memref<1x1xf32, #tpu.memory_space<vmem>>) attributes {dimension_semantics = [], scalar_prefetch = 0 : i64, scratch_operands = 0 : i64, tpu.core_type = #tpu.core_type<tc>} {
    %c0 = arith.constant 0 : index
    %0 = memref.load %arg0[%c0] : memref<1xi32, #tpu.memory_space<smem>>
    %c0_0 = arith.constant 0 : index
    %c0_1 = arith.constant 0 : index
    %1 = vector.load %arg1[%c0_0, %c0_1] : memref<8x128xf32, #tpu.memory_space<vmem>>, vector<8x128xf32>
    %c0_2 = arith.constant 0 : index
    %c0_3 = arith.constant 0 : index
    %2 = vector.load %arg2[%c0_2, %c0_3] : memref<8x128xi32, #tpu.memory_space<vmem>>, vector<8x128xi32>
    %c0_4 = arith.constant 0 : index
    %c0_5 = arith.constant 0 : index
    %3 = vector.load %arg3[%c0_4, %c0_5] : memref<8x1xf32, #tpu.memory_space<vmem>>, vector<8x1xf32>
    %c1_i32 = arith.constant 1 : i32
    %4 = tpu.dynamic_rotate %2 by %c1_i32 dim 1 : vector<8x128xi32>, i32 -> vector<8x128xi32>
    %5 = tpu.iota {dimensions = array<i32: 1>} : vector<8x128xi32>
    %6 = vector.broadcast %0 : i32 to vector<8x128xi32>
    %7 = arith.cmpi ne, %4, %6 : vector<8x128xi32>
    %c0_i32 = arith.constant 0 : i32
    %8 = vector.broadcast %c0_i32 : i32 to vector<8x128xi32>
    %9 = arith.cmpi eq, %5, %8 : vector<8x128xi32>
    %10 = arith.ori %7, %9 : vector<8x128xi1>
    %11 = arith.extui %10 : vector<8x128xi1> to vector<8x128xi32>
    %12 = arith.sitofp %11 : vector<8x128xi32> to vector<8x128xf32>
    %13 = arith.mulf %1, %12 : vector<8x128xf32>
    %cst = arith.constant dense<0.000000e+00> : vector<8xf32>
    %14 = vector.multi_reduction <add>, %13, %cst [1] : vector<8x128xf32> to vector<8xf32>
    %15 = vector.shape_cast %14 : vector<8xf32> to vector<8x1xf32>
    %cst_6 = arith.constant 0.000000e+00 : f32
    %16 = vector.broadcast %cst_6 : f32 to vector<8x1xf32>
    %17 = arith.subf %16, %3 : vector<8x1xf32>
    %18 = arith.mulf %17, %15 : vector<8x1xf32>
    %cst_7 = arith.constant dense<0.000000e+00> : vector<1xf32>
    %19 = vector.multi_reduction <add>, %18, %cst_7 [0] : vector<8x1xf32> to vector<1xf32>
    %20 = vector.shape_cast %19 : vector<1xf32> to vector<1x1xf32>
    %cst_8 = arith.constant 8.000000e+00 : f32
    %21 = vector.broadcast %cst_8 : f32 to vector<1x1xf32>
    %22 = arith.divf %20, %21 : vector<1x1xf32>
    %c0_9 = arith.constant 0 : index
    %c0_10 = arith.constant 0 : index
    %23 = vector.load %arg4[%c0_9, %c0_10] : memref<1x1xf32, #tpu.memory_space<vmem>>, vector<1x1xf32>
    tpu.vector_store %arg4[%c0_9, %c0_10], %22 {strides = array<i32>} : memref<1x1xf32, #tpu.memory_space<vmem>>, vector<1x1xf32>,
    return
  }
}

</mosaic_0001>

<llo_original>
// kernel: tpu_custom_call.1
$region0: #{tpu_custom_call.1}
  #allocation0 [shape = 'u32[]', space=smem, size = 0x4, offset = 0x4, fixed_abs, tag = 'smem constant byte address 0x4 - core index']
  #allocation1 [shape = 'u32[144,128]{1,0:T(1,128)}', space=vmem, size = 0x12000, scoped, tag = 'internal scratch']
  #allocation2 [shape = 's32[1]{0:T(128)S(6)}', space=smem, size = 0x200, scoped, tag = 'scoped memory for tpu_custom_call.1']
  %s0 = inlined_call_operand.<no memory space> [shape: s32[1], index: 0, kind: input, shape index: {}]
  %s1 = inlined_call_operand.vmem [shape: f32[8,128], index: 1, kind: input, shape index: {}]
  %s2 = inlined_call_operand.vmem [shape: s32[8,128], index: 2, kind: input, shape index: {}]
  %s3 = inlined_call_operand.vmem [shape: f32[8,1], index: 3, kind: input, shape index: {}]
  %s4 = inlined_call_operand.hbm [shape: f32[1,1], index: 4, kind: output, shape index: {}]
  %s5 = sld [smem:[#allocation0]]
  $region26: #{tpu_custom_call.1} parent=0
    _
  %s7 = ssub.s32 1, %s5
  %s8 = scalar_select 0, %s7, %s5
  %9 = sst [smem:[#allocation2]] %s0
  $region1: #{tpu_custom_call.1} parent=0
    #allocation3 [shape = 'u8[512]{0}', space=vmem, size = 0x400, scoped, tag = 'output window, operand 0, single buffered']
    #allocation4 [shape = 's32[1]{0}', space=sflag, size = 0x4, scoped, tag = 'scoped memory for tpu_custom_call.1']
    %10 = vsyncpa [#allocation4], 0
    // Predicated region
    $region2: #{tpu_custom_call.1} parent=1 // pred_check
      _
    $region3: #{tpu_custom_call.1} parent=1 // pred_check_branch
      %12 = sbr.rel (0) target = $region5
    $region4: #{tpu_custom_call.1} parent=1 // pred_region
      _
    $region5: #{tpu_custom_call.1} parent=1 // pred_fallthru
      _
    // Predicated region
    $region6: #{tpu_custom_call.1} parent=1 // pred_check
      _
    $region7: #{tpu_custom_call.1} parent=1 // pred_check_branch
      %14 = sbr.rel (0) target = $region9
    $region8: #{tpu_custom_call.1} parent=1 // pred_region
      _
    $region9: #{tpu_custom_call.1} parent=1 // pred_fallthru
      _
    // Predicated region
    $region10: #{tpu_custom_call.1} parent=1 // pred_check
      _
    $region11: #{tpu_custom_call.1} parent=1 // pred_check_branch
      %16 = sbr.rel (0) target = $region13
    $region12: #{tpu_custom_call.1} parent=1 // pred_region
      _
    $region13: #{tpu_custom_call.1} parent=1 // pred_fallthru
      _
    // Predicated region
    $region14: #{tpu_custom_call.1} parent=1 // pred_check
      _
    $region15: #{tpu_custom_call.1} parent=1 // pred_check_branch
      %18 = sbr.rel (0) target = $region17
    $region16: #{tpu_custom_call.1} parent=1 // pred_region
      _
    $region17: #{tpu_custom_call.1} parent=1 // pred_fallthru
      _
    %s19 = sld [smem:[#allocation2]]
    %v20 = vld [vmem:[%s1] sm:$0xff]
    %v21 = vld [vmem:[%s2] sm:$0xff]
    %v22 = vld [vmem:[%s3] sm:$0xff]
    %23 = vrot.lane.b32.xlu0 %v21, 1
    %v24 = vpop.permute.xlu0 %23
    %v25 = vlaneseq
    %v26 = vand.u32 %v25, 127
    %v27 = vstv %s19
    %vm28 = vcmp.ne.s32.totalorder %v24, %v27
    %vm29 = vcmp.eq.s32.totalorder %v26, 0
    %vm30 = vmor %vm28, %vm29
    %v31 = vsel %vm30, 1, 0
    %v32 = vcvt.s32.f32 %v31
    %v33 = vmul.f32 %v20, %v32
    %34 = vadd.xlane.f32.xlu0 %v33
    %v35 = vpop.xlane.xlu0 %34
    %v36 = vsub.f32 0.0, %v22
    %v37 = vmul.f32 %v36, %v35
    %vm38 = vcmask 7168
    %v39 = vsel %vm38, %v37, 0.0
    %v40 = vrot.slane %v39, 4
    %v41 = vadd.f32 %v39, %v40
    %v42 = vrot.slane %v41, 2
    %v43 = vadd.f32 %v41, %v42
    %v44 = vrot.slane %v43, 1
    %v45 = vadd.f32 %v43, %v44
    %v46 = vrcp.pop 8.0
    %v47 = vmul.f32 %v45, %v46
    %vm48 = vcmask 0
    %49 = vst.msk [vmem:[#allocation3] sm:$0x1] %vm48, %v47
    // Predicated region
    $region18: #{tpu_custom_call.1} parent=1 // pred_check
      _
    $region19: #{tpu_custom_call.1} parent=1 // pred_check_branch
      %51 = sbr.rel (0) target = $region21
    $region20: #{tpu_custom_call.1} parent=1 // pred_region
      %s53 = ssub.s32 16, 16
      %54 = vsyncadd [#allocation4], %s53
      %s56 = sshll.u32 [#allocation3], 4
      %s57 = int_to_ptr.vmem [resolvable:$true] %s56
      %59 = dma.vmem_to_hbm [thread:$0]  %s57, 16, %s4, [#allocation4]
    $region21: #{tpu_custom_call.1} parent=1 // pred_fallthru
      _
    // Predicated region
    $region22: #{tpu_custom_call.1} parent=1 // pred_check
      _
    $region23: #{tpu_custom_call.1} parent=1 // pred_check_branch
      %61 = sbr.rel (0) target = $region25
    $region24: #{tpu_custom_call.1} parent=1 // pred_region
      %62 = dma.done [#allocation4], 16
    $region25: #{tpu_custom_call.1} parent=1 // pred_fallthru
      _
    %63 = vsyncpa [#allocation4], 1

</llo_original>
